<compile_context>
chip_gen: v7x
topology: tpu7x:2x2x1
jax: 0.10.0
libtpu: 0.0.40
codegen_flags: <defaults>
</compile_context>

<pallas_src>
import functools
import math

import numpy as np
import jax
import jax.numpy as jnp
from jax import lax
from jax.experimental import pallas as pl
from jax.experimental.pallas import tpu as pltpu


# ---------------------------------------------------------------------------
# small helpers
# ---------------------------------------------------------------------------

def _pick_tile(L, max_tile):
    """Pick a lane-tile size for a flattened-spatial axis of length L.

    Prefers a 128-multiple divisor of L (no padding, no post-kernel slice);
    falls back to max_tile with padding.
    """
    if L <= max_tile:
        return L, L                          # single full-extent tile (always legal)
    for t in range(max_tile, 127, -128):     # multiples of 128 only
        if L % t == 0:
            return t, L
    t = max_tile
    return t, ((L + t - 1) // t) * t


def _pad_lane(x, Lp):
    L = x.shape[-1]
    if L == Lp:
        return x
    pad = [(0, 0)] * (x.ndim - 1) + [(0, Lp - L)]
    return jnp.pad(x, pad)


# ---------------------------------------------------------------------------
# Pallas kernel 1: fused heads (center heatmap + conv_down + ws@g)
# ---------------------------------------------------------------------------

def _heads_kernel(w_ref, b_ref, ws_ref, x_ref, c_ref, g_ref, s_ref, *, gfd):
    # One stacked MXU matmul over a single read of the (Cin, t) feature tile:
    #   rows [0:gfd]       -> conv_down  (global features g)
    #   row  [gfd:gfd+1]   -> center row of keypoint_center_conv
    # plus S = ws @ g (SpatialAtten matmul hoisted out of the instance loop).
    x = x_ref[...]                                              # (Cin, t) bf16
    y = jnp.dot(w_ref[...], x, preferred_element_type=jnp.float32) + b_ref[...]
    g = y[:gfd, :]                                              # (gfd, t) f32
    c = y[gfd:gfd + 1, :]                                       # (1, t)   f32
    g_ref[...] = g.astype(g_ref.dtype)
    c_ref[...] = jnp.clip(jax.nn.sigmoid(c), 1e-4, 1.0 - 1e-4).astype(c_ref.dtype)
    s_ref[...] = jnp.dot(ws_ref[...], g,
                         preferred_element_type=jnp.float32).astype(s_ref.dtype)


def heads(params, ws, x_cf, max_tile=4096):
    """x_cf: (Cin, L) channel-first f32.

    Returns:
      center (1, L)  sigmoid-clamped center heatmap (last channel of kc head),
      g      (gfd, L) conv_down global features,
      S      (gfd, L) = fuse_w[:, gfd:] @ g   (SpatialAtten branch, pre-mask).
    """
    gfd, cin = params["down_w"].shape
    L = x_cf.shape[1]
    t, Lp = _pick_tile(L, max_tile)
    # bf16 for the dominant HBM read / MXU operands; f32 accumulation.
    w_stack = jnp.concatenate([params["down_w"], params["kc_w"][-1:]],
                              axis=0).astype(jnp.bfloat16)       # (gfd+1, Cin)
    b_stack = jnp.concatenate([params["down_b"], params["kc_b"][-1:]],
                              axis=0).astype(jnp.float32).reshape(gfd + 1, 1)
    xp = _pad_lane(x_cf.astype(jnp.bfloat16), Lp)

    center, g, s = pl.pallas_call(
        functools.partial(_heads_kernel, gfd=gfd),
        out_shape=(jax.ShapeDtypeStruct((1, Lp), jnp.float32),
                   jax.ShapeDtypeStruct((gfd, Lp), jnp.float32),
                   jax.ShapeDtypeStruct((gfd, Lp), jnp.float32)),
        grid=(Lp // t,),
        in_specs=[
            pl.BlockSpec((gfd + 1, cin), lambda si: (0, 0)),     # stacked weights
            pl.BlockSpec((gfd + 1, 1), lambda si: (0, 0)),
            pl.BlockSpec((gfd, gfd), lambda si: (0, 0)),         # ws (fuse spatial half)
            pl.BlockSpec((cin, t), lambda si: (0, si)),
        ],
        out_specs=(pl.BlockSpec((1, t), lambda si: (0, si)),
                   pl.BlockSpec((gfd, t), lambda si: (0, si)),
                   pl.BlockSpec((gfd, t), lambda si: (0, si))),
        compiler_params=pltpu.CompilerParams(dimension_semantics=("parallel",)),
    )(w_stack, b_stack, ws.astype(jnp.float32), xp)
    if Lp != L:
        center, g, s = center[:, :L], g[:, :L], s[:, :L]
    return center, g, s


# ---------------------------------------------------------------------------
# Pallas kernel 2: fused per-instance tail
#   (ChannelAtten-folded fuse conv + SpatialAtten mask multiply + relu
#    + heatmap 1x1 conv + sigmoid-clamp), invalid proposals skipped.
# ---------------------------------------------------------------------------

def _instance_tail_kernel(nv_ref, g_ref, s_ref, m_ref, wc_ref, fb_ref,
                          hw_ref, hb_ref, o_ref):
    i = pl.program_id(1)                       # instance (inner grid axis)
    n_valid = nv_ref[0]                        # scalar-prefetched valid count

    @pl.when(i < n_valid)
    def _():
        g = g_ref[...]                         # (gfd, t), VMEM-resident across instances
        fuse = (jnp.dot(wc_ref[0], g, preferred_element_type=jnp.float32)
                + s_ref[...] * m_ref[0]        # (ws @ g) * mask  -- matmul hoisted
                + fb_ref[...])
        fuse = jnp.maximum(fuse, 0.0)
        hm = jnp.dot(hw_ref[...], fuse, preferred_element_type=jnp.float32) + hb_ref[...]
        hm = jnp.clip(jax.nn.sigmoid(hm), 1e-4, 1.0 - 1e-4)
        o_ref[...] = hm[None].astype(o_ref.dtype)

    @pl.when(i >= n_valid)
    def _():
        o_ref[...] = jnp.zeros_like(o_ref)     # skipped proposals: zero-fill


def instance_tail(n_valid, g_cf, s_cf, mask, wc_scaled, fuse_b, hm_w, hm_b,
                  max_tile=8192):
    """g_cf, s_cf: (gfd, L); mask: (K, L); wc_scaled: (K, gfd, gfd).

    Returns (K, J, L) instance heatmaps (rows >= n_valid are zeros).
    """
    gfd, L = g_cf.shape
    K = mask.shape[0]
    J = hm_w.shape[0]
    t, Lp = _pick_tile(L, max_tile)
    g_p = _pad_lane(g_cf, Lp)
    s_p = _pad_lane(s_cf, Lp)
    m_p = _pad_lane(mask.reshape(K, 1, L), Lp)

    out = pl.pallas_call(
        _instance_tail_kernel,
        out_shape=jax.ShapeDtypeStruct((K, J, Lp), jnp.float32),
        grid_spec=pltpu.PrefetchScalarGridSpec(
            num_scalar_prefetch=1,
            # spatial outer / instance inner: g and S block indices are constant
            # over the inner loop -> fetched once per spatial tile, stay resident.
            grid=(Lp // t, K),
            in_specs=[
                pl.BlockSpec((gfd, t), lambda sp, i, nv: (0, sp)),       # g
                pl.BlockSpec((gfd, t), lambda sp, i, nv: (0, sp)),       # S = ws @ g
                pl.BlockSpec((1, 1, t), lambda sp, i, nv: (i, 0, sp)),   # mask_i
                pl.BlockSpec((1, gfd, gfd), lambda sp, i, nv: (i, 0, 0)),  # wc_scaled_i
                pl.BlockSpec((gfd, 1), lambda sp, i, nv: (0, 0)),
                pl.BlockSpec((J, gfd), lambda sp, i, nv: (0, 0)),
                pl.BlockSpec((J, 1), lambda sp, i, nv: (0, 0)),
            ],
            out_specs=pl.BlockSpec((1, J, t), lambda sp, i, nv: (i, 0, sp)),
        ),
        compiler_params=pltpu.CompilerParams(
            # no cross-iteration carry -> both axes stay parallel (megacore OK)
            dimension_semantics=("parallel", "parallel")),
    )(n_valid, g_p, s_p, m_p, wc_scaled,
      fuse_b.reshape(gfd, 1), hm_w, hm_b.reshape(J, 1))
    if Lp != L:
        out = out[:, :, :L]
    return out


# ---------------------------------------------------------------------------
# forward (jittable, static shapes) + thin host wrapper
# ---------------------------------------------------------------------------

def _bilinear_to(x, H, W):
    return jax.image.resize(x, (x.shape[0], x.shape[1], H, W), method="bilinear")


@functools.partial(jax.jit, static_argnames=("max_k", "center_pool_kernel"))
def _cid_forward_core(params, features, detection_threshold, max_k, center_pool_kernel):
    f0 = features[0]
    _, _, H, W = f0.shape
    ups = [f0] + [_bilinear_to(f, H, W) for f in features[1:]]
    feats = jnp.concatenate(ups, axis=1)                    # (1, Cin, H, W)
    Cin = feats.shape[1]
    HW = H * W
    x_cf = feats.reshape(Cin, HW)                           # channel-first, spatial on lanes

    num_joints = params["hm_w"].shape[0]
    gfd = params["down_w"].shape[0]
    ws = params["fuse_w"][:, gfd:]                          # SpatialAtten half of fuse conv

    # --- fused heads: center heatmap + conv_down + (ws @ g), one feature read ---
    # (joint channels of keypoint_center_conv are not consumed in this path)
    center, g_cf, s_cf = heads(params, ws, x_cf)            # (1,HW), (gfd,HW), (gfd,HW)

    # --- center heatmap pooling / NMS / top-k proposals (tiny; plain XLA) ---
    center = center.reshape(1, H, W)
    pk = center_pool_kernel
    pool = lax.reduce_window(center, 0.0, lax.add, (1, pk, pk), (1, 1, 1),
                             [(0, 0), ((pk - 1) // 2,) * 2, ((pk - 1) // 2,) * 2])
    center = (center + pool / float(pk * pk)) / 2.0
    map_size = (H + W) / 2.0
    mk = 7 if map_size > 300 else (5 if map_size > 200 else 3)
    maxm = lax.reduce_window(center, -jnp.inf, lax.max, (1, mk, mk), (1, 1, 1),
                             [(0, 0), ((mk - 1) // 2,) * 2, ((mk - 1) // 2,) * 2])
    center = center * (maxm == center).astype(center.dtype)

    scores, pos_ind = lax.top_k(center.reshape(-1), max_k)
    valid = scores > detection_threshold
    n_valid = jnp.sum(valid).astype(jnp.int32).reshape(1)   # valid proposals are a prefix
    x_ind = pos_ind % W
    y_ind = pos_ind // W

    # --- per-instance params + ChannelAtten/SpatialAtten Linears (tiny -> XLA) ---
    ip_cf = jnp.take(x_cf, pos_ind, axis=1)                 # (Cin, K) from f32 features
    w_cs = jnp.concatenate([params["catn_w"], params["satn_w"]], axis=0)
    b_cs = jnp.concatenate([params["catn_b"], params["satn_b"]], axis=0)
    scales = (jnp.dot(w_cs, ip_cf) + b_cs[:, None]).T       # (K, 2*gfd)
    c_scales = scales[:, :gfd]
    s_scales = scales[:, gfd:]

    # SpatialAtten channel-weighted sum: one small matmul for all instances.
    fsum = jnp.dot(s_scales, g_cf)                          # (K, HW)

    # --- spatial mask: 5x5 conv over [fsum, rel_x, rel_y] + sigmoid (XLA conv) ---
    xg = lax.broadcasted_iota(jnp.float32, (H, W), 1)
    yg = lax.broadcasted_iota(jnp.float32, (H, W), 0)
    rel_x = (x_ind.astype(jnp.float32)[:, None, None] - xg[None]) / 32.0
    rel_y = (y_ind.astype(jnp.float32)[:, None, None] - yg[None]) / 32.0
    conv_in = jnp.stack([fsum.reshape(max_k, H, W), rel_x, rel_y], axis=1)  # (K,3,H,W)
    logits = lax.conv_general_dilated(
        conv_in, params["sconv_w"], (1, 1), ((2, 2), (2, 2)),
        dimension_numbers=("NCHW", "OIHW", "NCHW"))
    mask = jax.nn.sigmoid(logits[:, 0] + params["sconv_b"][0])              # (K,H,W)

    # --- fold ChannelAtten into per-instance fuse weights (XLA precompute) ---
    wc_scaled = params["fuse_w"][:, :gfd][None, :, :] * c_scales[:, None, :]  # (K,gfd,gfd)

    # --- fused per-instance tail (Pallas), invalid proposals skipped ---
    inst_hm = instance_tail(n_valid, g_cf, s_cf, mask.reshape(max_k, HW),
                            wc_scaled, params["fuse_b"],
                            params["hm_w"], params["hm_b"])  # (K, J, HW)
    inst_hm = inst_hm.reshape(max_k, num_joints, H, W)
    return inst_hm, scores, valid


def cid_head_forward_test(params, features, test_cfg):
    assert not test_cfg.get("flip_test", False), \
        "TODO(synk): flip_test branch is not ported"
    B = features[0].shape[0]
    assert B == 1, "forward_test (no flip) supports a single image; got batch %d" % B
    H, W = features[0].shape[2], features[0].shape[3]
    max_k = int(min(test_cfg.get("max_num_people", 30), H * W))
    pool_k = int(test_cfg.get("center_pool_kernel", 3))
    thre = jnp.float32(test_cfg.get("detection_threshold", 0.01))

    inst_hm, scores, valid = _cid_forward_core(params, tuple(features), thre,
                                               max_k, pool_k)
    # Single device->host sync for the dynamic-shape proposal filtering.
    valid_np = np.asarray(valid)
    if not valid_np.any():
        return [], []
    sel = jnp.asarray(np.nonzero(valid_np)[0])
    return inst_hm[sel], scores[sel]


# ---------------------------------------------------------------------------
# parameter init (PyTorch-native (out, in) weight layouts)
# ---------------------------------------------------------------------------

def init_params(key, in_channels, gfd, num_joints, prior_prob=0.01):
    std = 0.001
    bias_value = -math.log((1.0 - prior_prob) / prior_prob)
    ks = jax.random.split(key, 7)
    return {
        "kc_w":   jax.random.normal(ks[0], (num_joints + 1, in_channels), jnp.float32) * std,
        "kc_b":   jnp.full((num_joints + 1,), bias_value, jnp.float32),
        "down_w": jax.random.normal(ks[1], (gfd, in_channels), jnp.float32) * std,
        "down_b": jnp.zeros((gfd,), jnp.float32),
        "catn_w": jax.random.normal(ks[2], (gfd, in_channels), jnp.float32) * std,
        "catn_b": jnp.zeros((gfd,), jnp.float32),
        "satn_w": jax.random.normal(ks[3], (gfd, in_channels), jnp.float32) * std,
        "satn_b": jnp.zeros((gfd,), jnp.float32),
        # SpatialAtten Conv2d(3 -> 1, 5x5): PyTorch OIHW layout (1, 3, 5, 5)
        "sconv_w": jax.random.normal(ks[4], (1, 3, 5, 5), jnp.float32) * std,
        "sconv_b": jnp.zeros((1,), jnp.float32),
        # fuse_attn Conv2d(2*gfd -> gfd, 1x1): (out, in)
        "fuse_w": jax.random.normal(ks[5], (gfd, 2 * gfd), jnp.float32) * std,
        "fuse_b": jnp.zeros((gfd,), jnp.float32),
        # heatmap_conv Conv2d(gfd -> J, 1x1): (out, in)
        "hm_w":   jax.random.normal(ks[6], (num_joints, gfd), jnp.float32) * std,
        "hm_b":   jnp.full((num_joints,), bias_value, jnp.float32),
    }


# ---------------------------------------------------------------------------
# main
# ---------------------------------------------------------------------------

if __name__ == "__main__":
    key = jax.random.PRNGKey(0)
    kf = jax.random.split(key, 5)
    B, C_lvl, H0 = 1, 4, 16
    features = [
        jax.random.normal(kf[0], (B, C_lvl, H0, H0), jnp.float32),
        jax.random.normal(kf[1], (B, C_lvl, H0 // 2, H0 // 2), jnp.float32),
        jax.random.normal(kf[2], (B, C_lvl, H0 // 4, H0 // 4), jnp.float32),
        jax.random.normal(kf[3], (B, C_lvl, H0 // 8, H0 // 8), jnp.float32),
    ]
    in_channels = 4 * C_lvl               # concat of 4 pyramid levels
    gfd_channels = 8
    num_joints = 3
    params = init_params(kf[4], in_channels, gfd_channels, num_joints)

    test_cfg = {"flip_test": False, "center_pool_kernel": 3,
                "max_num_people": 8, "detection_threshold": 0.001}

    instance_heatmaps, scores = cid_head_forward_test(params, features, test_cfg)
    jax.block_until_ready(instance_heatmaps)
    jax.block_until_ready(scores)
    assert instance_heatmaps.ndim == 4 and instance_heatmaps.shape[1] == num_joints
    assert instance_heatmaps.shape[0] == scores.shape[0]
    print("KERNEL_OK")
</pallas_src>

<mosaic_0001>
module attributes {stable_mosaic.version = 11 : i64} {
  func.func @_heads_kernel(%arg0: i32, %arg1: memref<9x16xbf16, #tpu.memory_space<vmem>>, %arg2: memref<9x1xf32, #tpu.memory_space<vmem>>, %arg3: memref<8x8xf32, #tpu.memory_space<vmem>>, %arg4: memref<16x256xbf16, #tpu.memory_space<vmem>>, %arg5: memref<1x256xf32, #tpu.memory_space<vmem>>, %arg6: memref<8x256xf32, #tpu.memory_space<vmem>>, %arg7: memref<8x256xf32, #tpu.memory_space<vmem>>) attributes {dimension_semantics = [#tpu.dimension_semantics<parallel>], iteration_bounds = array<i64: 1>, scalar_prefetch = 0 : i64, scratch_operands = 0 : i64, tpu.core_type = #tpu.core_type<tc>, window_params = [{pipeline_mode = #tpu.pipeline_mode<synchronous>, transform_indices = @transform_0, window_bounds = array<i64: 9, 16>}, {pipeline_mode = #tpu.pipeline_mode<synchronous>, transform_indices = @transform_1, window_bounds = array<i64: 9, 1>}, {pipeline_mode = #tpu.pipeline_mode<synchronous>, transform_indices = @transform_2, window_bounds = array<i64: 8, 8>}, {transform_indices = @transform_3, window_bounds = array<i64: 16, 256>}, {transform_indices = @transform_4, window_bounds = array<i64: 1, 256>}, {transform_indices = @transform_5, window_bounds = array<i64: 8, 256>}, {transform_indices = @transform_6, window_bounds = array<i64: 8, 256>}]} {
    %c0 = arith.constant 0 : index
    %c0_0 = arith.constant 0 : index
    %0 = vector.load %arg4[%c0, %c0_0] : memref<16x256xbf16, #tpu.memory_space<vmem>>, vector<16x256xbf16>
    %c0_1 = arith.constant 0 : index
    %c0_2 = arith.constant 0 : index
    %1 = vector.load %arg1[%c0_1, %c0_2] : memref<9x16xbf16, #tpu.memory_space<vmem>>, vector<9x16xbf16>
    %cst = arith.constant dense<0.000000e+00> : vector<9x256xf32>
    %2 = tpu.matmul %1, %0, %cst {dimension_numbers = #tpu.dot_dimension_numbers<[1], [0], [0], [1], [0, 0, 1, 1], [], []>} : vector<9x16xbf16>, vector<16x256xbf16>, vector<9x256xf32> -> vector<9x256xf32>
    %c0_3 = arith.constant 0 : index
    %c0_4 = arith.constant 0 : index
    %3 = vector.load %arg2[%c0_3, %c0_4] : memref<9x1xf32, #tpu.memory_space<vmem>>, vector<9x1xf32>
    %4 = vector.broadcast %3 : vector<9x1xf32> to vector<9x256xf32>
    %5 = arith.addf %2, %4 : vector<9x256xf32>
    %6 = vector.extract_strided_slice %5 {offsets = [0, 0], sizes = [8, 256], strides = [1, 1]} : vector<9x256xf32> to vector<8x256xf32>
    %7 = vector.extract_strided_slice %5 {offsets = [8, 0], sizes = [1, 256], strides = [1, 1]} : vector<9x256xf32> to vector<1x256xf32>
    %c0_5 = arith.constant 0 : index
    %c0_6 = arith.constant 0 : index
    %8 = vector.load %arg6[%c0_5, %c0_6] : memref<8x256xf32, #tpu.memory_space<vmem>>, vector<8x256xf32>
    tpu.vector_store %arg6[%c0_5, %c0_6], %6 {strides = array<i32>} : memref<8x256xf32, #tpu.memory_space<vmem>>, vector<8x256xf32>,
    %9 = arith.negf %7 : vector<1x256xf32>
    %10 = math.exp %9 : vector<1x256xf32>
    %cst_7 = arith.constant 1.000000e+00 : f32
    %11 = vector.broadcast %cst_7 : f32 to vector<1x256xf32>
    %12 = arith.addf %11, %10 : vector<1x256xf32>
    %13 = arith.divf %11, %12 : vector<1x256xf32>
    %cst_8 = arith.constant 9.99999974E-5 : f32
    %cst_9 = arith.constant 0.999899983 : f32
    %14 = vector.broadcast %cst_8 : f32 to vector<1x256xf32>
    %15 = arith.maximumf %14, %13 : vector<1x256xf32>
    %16 = vector.broadcast %cst_9 : f32 to vector<1x256xf32>
    %17 = arith.minimumf %16, %15 : vector<1x256xf32>
    %c0_10 = arith.constant 0 : index
    %c0_11 = arith.constant 0 : index
    %18 = vector.load %arg5[%c0_10, %c0_11] : memref<1x256xf32, #tpu.memory_space<vmem>>, vector<1x256xf32>
    tpu.vector_store %arg5[%c0_10, %c0_11], %17 {strides = array<i32>} : memref<1x256xf32, #tpu.memory_space<vmem>>, vector<1x256xf32>,
    %c0_12 = arith.constant 0 : index
    %c0_13 = arith.constant 0 : index
    %19 = vector.load %arg3[%c0_12, %c0_13] : memref<8x8xf32, #tpu.memory_space<vmem>>, vector<8x8xf32>
    %cst_14 = arith.constant dense<0.000000e+00> : vector<8x256xf32>
    %20 = tpu.matmul %19, %6, %cst_14 {dimension_numbers = #tpu.dot_dimension_numbers<[1], [0], [0], [1], [0, 0, 1, 1], [], []>} : vector<8x8xf32>, vector<8x256xf32>, vector<8x256xf32> -> vector<8x256xf32>
    %c0_15 = arith.constant 0 : index
    %c0_16 = arith.constant 0 : index
    %21 = vector.load %arg7[%c0_15, %c0_16] : memref<8x256xf32, #tpu.memory_space<vmem>>, vector<8x256xf32>
    tpu.vector_store %arg7[%c0_15, %c0_16], %20 {strides = array<i32>} : memref<8x256xf32, #tpu.memory_space<vmem>>, vector<8x256xf32>,
    return
  }
  func.func @transform_0(%arg0: i32) -> (i32, i32) {
    %c0_i32 = arith.constant 0 : i32
    %c0_i32_0 = arith.constant 0 : i32
    %c0_i32_1 = arith.constant 0 : i32
    return %c0_i32, %c0_i32_0 : i32, i32
  }
  func.func @transform_1(%arg0: i32) -> (i32, i32) {
    %c0_i32 = arith.constant 0 : i32
    %c0_i32_0 = arith.constant 0 : i32
    %c0_i32_1 = arith.constant 0 : i32
    return %c0_i32, %c0_i32_0 : i32, i32
  }
  func.func @transform_2(%arg0: i32) -> (i32, i32) {
    %c0_i32 = arith.constant 0 : i32
    %c0_i32_0 = arith.constant 0 : i32
    %c0_i32_1 = arith.constant 0 : i32
    return %c0_i32, %c0_i32_0 : i32, i32
  }
  func.func @transform_3(%arg0: i32) -> (i32, i32) {
    %c0_i32 = arith.constant 0 : i32
    %c0_i32_0 = arith.constant 0 : i32
    return %c0_i32, %arg0 : i32, i32
  }
  func.func @transform_4(%arg0: i32) -> (i32, i32) {
    %c0_i32 = arith.constant 0 : i32
    %c0_i32_0 = arith.constant 0 : i32
    return %c0_i32, %arg0 : i32, i32
  }
  func.func @transform_5(%arg0: i32) -> (i32, i32) {
    %c0_i32 = arith.constant 0 : i32
    %c0_i32_0 = arith.constant 0 : i32
    return %c0_i32, %arg0 : i32, i32
  }
  func.func @transform_6(%arg0: i32) -> (i32, i32) {
    %c0_i32 = arith.constant 0 : i32
    %c0_i32_0 = arith.constant 0 : i32
    return %c0_i32, %arg0 : i32, i32
  }
}

module attributes {stable_mosaic.version = 11 : i64} {
  func.func @_instance_tail_kernel(%arg0: i32, %arg1: i32, %arg2: memref<1xi32, #tpu.memory_space<smem>>, %arg3: memref<8x256xf32, #tpu.memory_space<vmem>>, %arg4: memref<8x256xf32, #tpu.memory_space<vmem>>, %arg5: memref<1x1x256xf32, #tpu.memory_space<vmem>>, %arg6: memref<1x8x8xf32, #tpu.memory_space<vmem>>, %arg7: memref<8x1xf32, #tpu.memory_space<vmem>>, %arg8: memref<3x8xf32, #tpu.memory_space<vmem>>, %arg9: memref<3x1xf32, #tpu.memory_space<vmem>>, %arg10: memref<1x3x256xf32, #tpu.memory_space<vmem>>) attributes {dimension_semantics = [#tpu.dimension_semantics<parallel>, #tpu.dimension_semantics<parallel>], iteration_bounds = array<i64: 1, 8>, scalar_prefetch = 1 : i64, scratch_operands = 0 : i64, tpu.core_type = #tpu.core_type<tc>, window_params = [{transform_indices = @transform_0, window_bounds = array<i64: 8, 256>}, {transform_indices = @transform_1, window_bounds = array<i64: 8, 256>}, {transform_indices = @transform_2, window_bounds = array<i64: 1, 1, 256>}, {transform_indices = @transform_3, window_bounds = array<i64: 1, 8, 8>}, {pipeline_mode = #tpu.pipeline_mode<synchronous>, transform_indices = @transform_4, window_bounds = array<i64: 8, 1>}, {pipeline_mode = #tpu.pipeline_mode<synchronous>, transform_indices = @transform_5, window_bounds = array<i64: 3, 8>}, {pipeline_mode = #tpu.pipeline_mode<synchronous>, transform_indices = @transform_6, window_bounds = array<i64: 3, 1>}, {transform_indices = @transform_7, window_bounds = array<i64: 1, 3, 256>}]} {
    %c0 = arith.constant 0 : index
    %0 = memref.load %arg2[%c0] : memref<1xi32, #tpu.memory_space<smem>>
    %1 = arith.cmpi slt, %arg1, %0 : i32
    %2 = arith.extui %1 : i1 to i32
    %c0_i32 = arith.constant 0 : i32
    %3 = arith.cmpi ne, %2, %c0_i32 : i32
    scf.if %3 {
      %c0_1 = arith.constant 0 : index
      %c0_2 = arith.constant 0 : index
      %7 = vector.load %arg3[%c0_1, %c0_2] : memref<8x256xf32, #tpu.memory_space<vmem>>, vector<8x256xf32>
      %c0_3 = arith.constant 0 : index
      %c0_4 = arith.constant 0 : index
      %c0_5 = arith.constant 0 : index
      %8 = vector.load %arg6[%c0_3, %c0_4, %c0_5] : memref<1x8x8xf32, #tpu.memory_space<vmem>>, vector<1x8x8xf32>
      %9 = vector.shape_cast %8 : vector<1x8x8xf32> to vector<8x8xf32>
      %cst = arith.constant dense<0.000000e+00> : vector<8x256xf32>
      %10 = tpu.matmul %9, %7, %cst {dimension_numbers = #tpu.dot_dimension_numbers<[1], [0], [0], [1], [0, 0, 1, 1], [], []>} : vector<8x8xf32>, vector<8x256xf32>, vector<8x256xf32> -> vector<8x256xf32>
      %c0_6 = arith.constant 0 : index
      %c0_7 = arith.constant 0 : index
      %11 = vector.load %arg4[%c0_6, %c0_7] : memref<8x256xf32, #tpu.memory_space<vmem>>, vector<8x256xf32>
      %c0_8 = arith.constant 0 : index
      %c0_9 = arith.constant 0 : index
      %c0_10 = arith.constant 0 : index
      %12 = vector.load %arg5[%c0_8, %c0_9, %c0_10] : memref<1x1x256xf32, #tpu.memory_space<vmem>>, vector<1x1x256xf32>
      %13 = vector.shape_cast %12 : vector<1x1x256xf32> to vector<1x256xf32>
      %14 = vector.broadcast %13 : vector<1x256xf32> to vector<8x256xf32>
      %15 = arith.mulf %11, %14 : vector<8x256xf32>
      %16 = arith.addf %10, %15 : vector<8x256xf32>
      %c0_11 = arith.constant 0 : index
      %c0_12 = arith.constant 0 : index
      %17 = vector.load %arg7[%c0_11, %c0_12] : memref<8x1xf32, #tpu.memory_space<vmem>>, vector<8x1xf32>
      %18 = vector.broadcast %17 : vector<8x1xf32> to vector<8x256xf32>
      %19 = arith.addf %16, %18 : vector<8x256xf32>
      %cst_13 = arith.constant 0.000000e+00 : f32
      %20 = vector.broadcast %cst_13 : f32 to vector<8x256xf32>
      %21 = arith.maximumf %19, %20 : vector<8x256xf32>
      %c0_14 = arith.constant 0 : index
      %c0_15 = arith.constant 0 : index
      %22 = vector.load %arg8[%c0_14, %c0_15] : memref<3x8xf32, #tpu.memory_space<vmem>>, vector<3x8xf32>
      %cst_16 = arith.constant dense<0.000000e+00> : vector<3x256xf32>
      %23 = tpu.matmul %22, %21, %cst_16 {dimension_numbers = #tpu.dot_dimension_numbers<[1], [0], [0], [1], [0, 0, 1, 1], [], []>} : vector<3x8xf32>, vector<8x256xf32>, vector<3x256xf32> -> vector<3x256xf32>
      %c0_17 = arith.constant 0 : index
      %c0_18 = arith.constant 0 : index
      %24 = vector.load %arg9[%c0_17, %c0_18] : memref<3x1xf32, #tpu.memory_space<vmem>>, vector<3x1xf32>
      %25 = vector.broadcast %24 : vector<3x1xf32> to vector<3x256xf32>
      %26 = arith.addf %23, %25 : vector<3x256xf32>
      %27 = arith.negf %26 : vector<3x256xf32>
      %28 = math.exp %27 : vector<3x256xf32>
      %cst_19 = arith.constant 1.000000e+00 : f32
      %29 = vector.broadcast %cst_19 : f32 to vector<3x256xf32>
      %30 = arith.addf %29, %28 : vector<3x256xf32>
      %31 = arith.divf %29, %30 : vector<3x256xf32>
      %cst_20 = arith.constant 9.99999974E-5 : f32
      %cst_21 = arith.constant 0.999899983 : f32
      %32 = vector.broadcast %cst_20 : f32 to vector<3x256xf32>
      %33 = arith.maximumf %32, %31 : vector<3x256xf32>
      %34 = vector.broadcast %cst_21 : f32 to vector<3x256xf32>
      %35 = arith.minimumf %34, %33 : vector<3x256xf32>
      %36 = vector.shape_cast %35 : vector<3x256xf32> to vector<1x3x256xf32>
      %c0_22 = arith.constant 0 : index
      %c0_23 = arith.constant 0 : index
      %c0_24 = arith.constant 0 : index
      %37 = vector.load %arg10[%c0_22, %c0_23, %c0_24] : memref<1x3x256xf32, #tpu.memory_space<vmem>>, vector<1x3x256xf32>
      tpu.vector_store %arg10[%c0_22, %c0_23, %c0_24], %36 {strides = array<i32>} : memref<1x3x256xf32, #tpu.memory_space<vmem>>, vector<1x3x256xf32>,
    } else {
    }
    %4 = arith.cmpi sge, %arg1, %0 : i32
    %5 = arith.extui %4 : i1 to i32
    %c0_i32_0 = arith.constant 0 : i32
    %6 = arith.cmpi ne, %5, %c0_i32_0 : i32
    scf.if %6 {
      %cst = arith.constant 0.000000e+00 : f32
      %7 = vector.broadcast %cst : f32 to vector<1x3x256xf32>
      %c0_1 = arith.constant 0 : index
      %c0_2 = arith.constant 0 : index
      %c0_3 = arith.constant 0 : index
      %8 = vector.load %arg10[%c0_1, %c0_2, %c0_3] : memref<1x3x256xf32, #tpu.memory_space<vmem>>, vector<1x3x256xf32>
      tpu.vector_store %arg10[%c0_1, %c0_2, %c0_3], %7 {strides = array<i32>} : memref<1x3x256xf32, #tpu.memory_space<vmem>>, vector<1x3x256xf32>,
    } else {
    }
    return
  }
  func.func @transform_0(%arg0: i32, %arg1: i32, %arg2: memref<1xi32, #tpu.memory_space<smem>>) -> (i32, i32) {
    %c0_i32 = arith.constant 0 : i32
    %c0_i32_0 = arith.constant 0 : i32
    return %c0_i32, %arg0 : i32, i32
  }
  func.func @transform_1(%arg0: i32, %arg1: i32, %arg2: memref<1xi32, #tpu.memory_space<smem>>) -> (i32, i32) {
    %c0_i32 = arith.constant 0 : i32
    %c0_i32_0 = arith.constant 0 : i32
    return %c0_i32, %arg0 : i32, i32
  }
  func.func @transform_2(%arg0: i32, %arg1: i32, %arg2: memref<1xi32, #tpu.memory_space<smem>>) -> (i32, i32, i32) {
    %c0_i32 = arith.constant 0 : i32
    %c0_i32_0 = arith.constant 0 : i32
    return %arg1, %c0_i32, %arg0 : i32, i32, i32
  }
  func.func @transform_3(%arg0: i32, %arg1: i32, %arg2: memref<1xi32, #tpu.memory_space<smem>>) -> (i32, i32, i32) {
    %c0_i32 = arith.constant 0 : i32
    %c0_i32_0 = arith.constant 0 : i32
    %c0_i32_1 = arith.constant 0 : i32
    return %arg1, %c0_i32, %c0_i32_0 : i32, i32, i32
  }
  func.func @transform_4(%arg0: i32, %arg1: i32, %arg2: memref<1xi32, #tpu.memory_space<smem>>) -> (i32, i32) {
    %c0_i32 = arith.constant 0 : i32
    %c0_i32_0 = arith.constant 0 : i32
    %c0_i32_1 = arith.constant 0 : i32
    return %c0_i32, %c0_i32_0 : i32, i32
  }
  func.func @transform_5(%arg0: i32, %arg1: i32, %arg2: memref<1xi32, #tpu.memory_space<smem>>) -> (i32, i32) {
    %c0_i32 = arith.constant 0 : i32
    %c0_i32_0 = arith.constant 0 : i32
    %c0_i32_1 = arith.constant 0 : i32
    return %c0_i32, %c0_i32_0 : i32, i32
  }
  func.func @transform_6(%arg0: i32, %arg1: i32, %arg2: memref<1xi32, #tpu.memory_space<smem>>) -> (i32, i32) {
    %c0_i32 = arith.constant 0 : i32
    %c0_i32_0 = arith.constant 0 : i32
    %c0_i32_1 = arith.constant 0 : i32
    return %c0_i32, %c0_i32_0 : i32, i32
  }
  func.func @transform_7(%arg0: i32, %arg1: i32, %arg2: memref<1xi32, #tpu.memory_space<smem>>) -> (i32, i32, i32) {
    %c0_i32 = arith.constant 0 : i32
    %c0_i32_0 = arith.constant 0 : i32
    return %arg1, %c0_i32, %arg0 : i32, i32, i32
  }
}

</mosaic_0001>

<llo_original>
// kernel: _cid_forward_core.2
$region0: #{_cid_forward_core.2}
  #allocation0 [shape = 'u32[]', space=smem, size = 0x4, offset = 0x4, fixed_abs, tag = 'smem constant byte address 0x4 - core index']
  #allocation1 [shape = 'u32[144,128]{1,0:T(1,128)}', space=vmem, size = 0x12000, scoped, tag = 'internal scratch']
  %s0 = inlined_call_operand.vmem [shape: bf16[9,16], index: 0, kind: input, shape index: {}]
  %s1 = inlined_call_operand.vmem [shape: f32[9,1], index: 1, kind: input, shape index: {}]
  %s2 = inlined_call_operand.vmem [shape: f32[8,8], index: 2, kind: input, shape index: {}]
  %s3 = inlined_call_operand.vmem [shape: bf16[16,256], index: 3, kind: input, shape index: {}]
  %s4 = inlined_call_operand.vmem [shape: f32[1,256], index: 4, kind: output, shape index: {0}]
  %s5 = inlined_call_operand.vmem [shape: f32[8,256], index: 5, kind: output, shape index: {1}]
  %s6 = inlined_call_operand.vmem [shape: f32[8,256], index: 6, kind: output, shape index: {2}]
  %7 = xla_tuple %s4, %s5, %s6
  %s8 = sld [smem:[#allocation0]]
  $region42: #{_cid_forward_core.2} parent=0
    _
  %s10 = ssub.s32 1, %s8
  %s11 = scalar_select 0, %s10, %s8
  // Predicated region
  $region2: #{_cid_forward_core.2} parent=0 // pred_check
    _
  $region3: #{_cid_forward_core.2} parent=0 // pred_check_branch
    %13 = sbr.rel (0) target = $region5
  $region4: #{_cid_forward_core.2} parent=0 // pred_region
    _
  $region5: #{_cid_forward_core.2} parent=0 // pred_fallthru
    _
  // Predicated region
  $region6: #{_cid_forward_core.2} parent=0 // pred_check
    _
  $region7: #{_cid_forward_core.2} parent=0 // pred_check_branch
    %15 = sbr.rel (0) target = $region9
  $region8: #{_cid_forward_core.2} parent=0 // pred_region
    _
  $region9: #{_cid_forward_core.2} parent=0 // pred_fallthru
    _
  // Predicated region
  $region10: #{_cid_forward_core.2} parent=0 // pred_check
    _
  $region11: #{_cid_forward_core.2} parent=0 // pred_check_branch
    %17 = sbr.rel (0) target = $region13
  $region12: #{_cid_forward_core.2} parent=0 // pred_region
    _
  $region13: #{_cid_forward_core.2} parent=0 // pred_fallthru
    _
  // Predicated region
  $region14: #{_cid_forward_core.2} parent=0 // pred_check
    _
  $region15: #{_cid_forward_core.2} parent=0 // pred_check_branch
    %19 = sbr.rel (0) target = $region17
  $region16: #{_cid_forward_core.2} parent=0 // pred_region
    _
  $region17: #{_cid_forward_core.2} parent=0 // pred_fallthru
    _
  %v21 = vld [vmem:[%s3] sm:$0xff]
  %v22 = vld [vmem:[%s3 + $0x8] sm:$0xff]
  %v23 = vld [vmem:[%s0] sm:$0xf]
  %v24 = vld [vmem:[%s0 + $0x4] sm:$0x1]
  %v25 = vld [vmem:[%s1] sm:$0xff]
  %v26 = vld [vmem:[%s1 + $0x8] sm:$0x1]
  %28 = vset.pattern.permute.xlu0 0
  %29 = vperm.xlu0 %28, %v25
  %v30 = vpop.permute.xlu0 %29
  %33 = vset.pattern.permute.xlu0 0
  %34 = vperm.xlu0 %33, %v26
  %v35 = vpop.permute.xlu0 %34
  %v39 = vunpack.c.l.b16 %v23
  %v40 = vunpack.c.l.b16 %v24
  %v41 = vpack.c.b16 %v40, %v39
  %v44 = vunpack.c.l.b16 %v21
  %v45 = vunpack.c.h.b16 %v21
  %v46 = vunpack.c.l.b16 %v22
  %v47 = vunpack.c.h.b16 %v22
  %v48 = vpack.c.b16 %v46, %v44
  %v49 = vpack.c.b16 %v47, %v45
  %vm52 = vcmask 130048
  %v54 = vsel %vm52, %v41, 0
  %56 = vmatprep.subr.bf16.mxu0 %v49
  %57 = vmatpush1.bf16.msra.mxu0 %v48
  %58 = vmatprep.subr.bf16.mxu0 0
  %59 = vmatpush1.bf16.msra.mxu0 0
  %60 = vmatprep.subr.bf16.mxu0 0
  %61 = vmatpush1.bf16.msra.mxu0 0
  %62 = vmatprep.subr.bf16.mxu0 0
  %63 = vmatpush1.bf16.msra.mxu0 0
  %64 = vmatprep.subr.bf16.mxu0 0
  %65 = vmatpush1.bf16.msra.mxu0 0
  %66 = vmatprep.subr.bf16.mxu0 0
  %67 = vmatpush1.bf16.msra.mxu0 0
  %68 = vmatprep.subr.bf16.mxu0 0
  %69 = vmatpush1.bf16.msra.mxu0 0
  %70 = vmatprep.subr.bf16.mxu0 0
  %71 = vmatpush1.bf16.msra.mxu0 0
  %72 = vmatprep.subr.bf16.mxu0 0
  %73 = vmatpush1.bf16.msra.mxu0 0
  %74 = vmatprep.subr.bf16.mxu0 0
  %75 = vmatpush1.bf16.msra.mxu0 0
  %76 = vmatprep.subr.bf16.mxu0 0
  %77 = vmatpush1.bf16.msra.mxu0 0
  %78 = vmatprep.subr.bf16.mxu0 0
  %79 = vmatpush1.bf16.msra.mxu0 0
  %80 = vmatprep.subr.bf16.mxu0 0
  %81 = vmatpush1.bf16.msra.mxu0 0
  %82 = vmatprep.subr.bf16.mxu0 0
  %83 = vmatpush1.bf16.msra.mxu0 0
  %84 = vmatprep.subr.bf16.mxu0 0
  %85 = vmatpush1.bf16.msra.mxu0 0
  %86 = vmatprep.subr.bf16.mxu0 0
  %87 = vmatpush1.bf16.msra.mxu0 0
  %88 = vmatprep.mubr.bf16.mxu0 0
  %89 = vmatmul.mubr.bf16.gmra.mrb[0].mxu0 %v54
  %v90 = vpop.f32.mrb[0].mxu0
  %v91 = vadd.f32 %v30, %v90
  %v92 = vpop.f32.mrb[0].mxu0
  %v93 = vadd.f32 %v30, %v92
  %v94 = vpop.f32.mrb[0].mxu0
  %v95 = vadd.f32 %v35, %v94
  %v96 = vpop.f32.mrb[0].mxu0
  %v97 = vadd.f32 %v35, %v96
  %98 = vdwg.mxu0
  %99 = vst [vmem:[%s5] sm:$0xff] %v91
  %100 = vst [vmem:[%s5 + $0x8] sm:$0xff] %v93
  %v101 = vxor.u32 %v95, 2147483648
  %v102 = vxor.u32 %v97, 2147483648
  %v103 = vmul.f32 %v101, 1.442695
  %v104 = vpow.pop %v103
  %v105 = vmul.f32 %v102, 1.442695
  %v106 = vpow.pop %v105
  %v107 = vadd.f32 %v104, 1.0
  %v108 = vadd.f32 %v106, 1.0
  %v109 = vrcp.pop %v107
  %v110 = vmul.f32 1.0, %v109
  %v111 = vrcp.pop %v108
  %v112 = vmul.f32 1.0, %v111
  %v113 = vmax.f32 %v110, 0.0001
  %v114 = vmax.f32 %v112, 0.0001
  %v115 = vmin.f32 %v113, 0.9999
  %v116 = vmin.f32 %v114, 0.9999
  %v119 = vcombine.low %v115, %v116
  %v121 = vunpack.c.l.s4 1966171168
  %v122 = vunpack.c.0.s8 %v121
  %v123 = vlaneseq
  %v124 = vshrl.u32 %v123, 7
  %v125 = vsub.s32 %v122, %v124
  %v126 = vrot.slane %v119, %v125
  %v128 = vunpack.c.l.s4 1966171168
  %v129 = vunpack.c.0.s8 %v128
  %v130 = vlaneseq
  %v131 = vshrl.u32 %v130, 7
  %v132 = vsub.s32 %v129, %v131
  %v133 = vrot.slane %v126, %v132
  %v135 = vlaneseq
  %vm136 = vcmp.ge.s32.totalorder %v135, 0
  %vm137 = vcmp.lt.s32.totalorder %v135, 256
  %vm138 = vmand %vm136, %vm137
  %139 = vst.msk [vmem:[%s4] sm:$0x3] %vm138, %v133
  %v140 = vld [vmem:[%s2] sm:$0xff]
  %vm141 = vcmask 64512
  %v143 = vsel %vm141, %v140, 0
  %145 = vmatprep.subr.mxu0 %v93
  %146 = vmatpush1.msra.mxu0 %v91
  %147 = vmatprep.subr.mxu0 0.0
  %148 = vmatpush1.msra.mxu0 0.0
  %149 = vmatprep.subr.mxu0 0.0
  %150 = vmatpush1.msra.mxu0 0.0
  %151 = vmatprep.subr.mxu0 0.0
  %152 = vmatpush1.msra.mxu0 0.0
  %153 = vmatprep.subr.mxu0 0.0
  %154 = vmatpush1.msra.mxu0 0.0
  %155 = vmatprep.subr.mxu0 0.0
  %156 = vmatpush1.msra.mxu0 0.0
  %157 = vmatprep.subr.mxu0 0.0
  %158 = vmatpush1.msra.mxu0 0.0
  %159 = vmatprep.subr.mxu0 0.0
  %160 = vmatpush1.msra.mxu0 0.0
  %161 = vmatprep.subr.mxu0 0.0
  %162 = vmatpush1.msra.mxu0 0.0
  %163 = vmatprep.subr.mxu0 0.0
  %164 = vmatpush1.msra.mxu0 0.0
  %165 = vmatprep.subr.mxu0 0.0
  %166 = vmatpush1.msra.mxu0 0.0
  %167 = vmatprep.subr.mxu0 0.0
  %168 = vmatpush1.msra.mxu0 0.0
  %169 = vmatprep.subr.mxu0 0.0
  %170 = vmatpush1.msra.mxu0 0.0
  %171 = vmatprep.subr.mxu0 0.0
  %172 = vmatpush1.msra.mxu0 0.0
  %173 = vmatprep.subr.mxu0 0.0
  %174 = vmatpush1.msra.mxu0 0.0
  %175 = vmatprep.subr.mxu0 0.0
  %176 = vmatpush1.msra.mxu0 0.0
  %177 = vmatprep.subr.mxu0 0.0
  %178 = vmatpush1.msra.mxu0 0.0
  %179 = vmatprep.subr.mxu0 0.0
  %180 = vmatpush1.msra.mxu0 0.0
  %181 = vmatprep.subr.mxu0 0.0
  %182 = vmatpush1.msra.mxu0 0.0
  %183 = vmatprep.subr.mxu0 0.0
  %184 = vmatpush1.msra.mxu0 0.0
  %185 = vmatprep.subr.mxu0 0.0
  %186 = vmatpush1.msra.mxu0 0.0
  %187 = vmatprep.subr.mxu0 0.0
  %188 = vmatpush1.msra.mxu0 0.0
  %189 = vmatprep.subr.mxu0 0.0
  %190 = vmatpush1.msra.mxu0 0.0
  %191 = vmatprep.subr.mxu0 0.0
  %192 = vmatpush1.msra.mxu0 0.0
  %193 = vmatprep.subr.mxu0 0.0
  %194 = vmatpush1.msra.mxu0 0.0
  %195 = vmatprep.subr.mxu0 0.0
  %196 = vmatpush1.msra.mxu0 0.0
  %197 = vmatprep.subr.mxu0 0.0
  %198 = vmatpush1.msra.mxu0 0.0
  %199 = vmatprep.subr.mxu0 0.0
  %200 = vmatpush1.msra.mxu0 0.0
  %201 = vmatprep.subr.mxu0 0.0
  %202 = vmatpush1.msra.mxu0 0.0
  %203 = vmatprep.subr.mxu0 0.0
  %204 = vmatpush1.msra.mxu0 0.0
  %205 = vmatprep.subr.mxu0 0.0
  %206 = vmatpush1.msra.mxu0 0.0
  %207 = vmatprep.subr.mxu0 0.0
  %208 = vmatpush1.msra.mxu0 0.0
  %209 = vmatprep.mubr.f32.mxu0 0.0
  %210 = vmatmul.mubr.f32.gmra.mrb[0].mxu0 %v143
  %v211 = vpop.f32.mrb[0].mxu0
  %v212 = vadd.f32 0.0, %v211
  %v213 = vpop.f32.mrb[0].mxu0
  %v214 = vadd.f32 0.0, %v213
  %215 = vdwg.mxu0
  %216 = vst [vmem:[%s6] sm:$0xff] %v212
  %217 = vst [vmem:[%s6 + $0x8] sm:$0xff] %v214
  // Predicated region
  $region18: #{_cid_forward_core.2} parent=0 // pred_check
    _
  $region19: #{_cid_forward_core.2} parent=0 // pred_check_branch
    %219 = sbr.rel (0) target = $region21
  $region20: #{_cid_forward_core.2} parent=0 // pred_region
    _
  $region21: #{_cid_forward_core.2} parent=0 // pred_fallthru
    _
  // Predicated region
  $region22: #{_cid_forward_core.2} parent=0 // pred_check
    _
  $region23: #{_cid_forward_core.2} parent=0 // pred_check_branch
    %221 = sbr.rel (0) target = $region25
  $region24: #{_cid_forward_core.2} parent=0 // pred_region
    _
  $region25: #{_cid_forward_core.2} parent=0 // pred_fallthru
    _
  // Predicated region
  $region26: #{_cid_forward_core.2} parent=0 // pred_check
    _
  $region27: #{_cid_forward_core.2} parent=0 // pred_check_branch
    %223 = sbr.rel (0) target = $region29
  $region28: #{_cid_forward_core.2} parent=0 // pred_region
    _
  $region29: #{_cid_forward_core.2} parent=0 // pred_fallthru
    _
  // Predicated region
  $region30: #{_cid_forward_core.2} parent=0 // pred_check
    _
  $region31: #{_cid_forward_core.2} parent=0 // pred_check_branch
    %225 = sbr.rel (0) target = $region33
  $region32: #{_cid_forward_core.2} parent=0 // pred_region
    _
  $region33: #{_cid_forward_core.2} parent=0 // pred_fallthru
    _
  // Predicated region
  $region34: #{_cid_forward_core.2} parent=0 // pred_check
    _
  $region35: #{_cid_forward_core.2} parent=0 // pred_check_branch
    %227 = sbr.rel (0) target = $region37
  $region36: #{_cid_forward_core.2} parent=0 // pred_region
    _
  $region37: #{_cid_forward_core.2} parent=0 // pred_fallthru
    _
  // Predicated region
  $region38: #{_cid_forward_core.2} parent=0 // pred_check
    _
  $region39: #{_cid_forward_core.2} parent=0 // pred_check_branch
    %229 = sbr.rel (0) target = $region41
  $region40: #{_cid_forward_core.2} parent=0 // pred_region
    _
  $region41: #{_cid_forward_core.2} parent=0 // pred_fallthru
    _

// kernel: _cid_forward_core.3
$region0: #{_cid_forward_core.3}
  #allocation0 [shape = 'u32[]', space=smem, size = 0x4, offset = 0x4, fixed_abs, tag = 'smem constant byte address 0x4 - core index']
  #allocation1 [shape = 'u32[144,128]{1,0:T(1,128)}', space=vmem, size = 0x12000, scoped, tag = 'internal scratch']
  #allocation2 [shape = 's32[1]{0}', space=sflag, size = 0x4, scoped, tag = 'scoped memory for _cid_forward_core.3']
  #allocation3 [shape = 's32[1]{0:T(128)S(6)}', space=smem, size = 0x200, scoped, tag = 'prefetched SMEM operand 0']
  %s0 = inlined_call_operand.<no memory space> [shape: s32[1], index: 0, kind: input, shape index: {}]
  %s1 = inlined_call_operand.vmem [shape: f32[8,256], index: 1, kind: input, shape index: {}]
  %s2 = inlined_call_operand.vmem [shape: f32[8,256], index: 2, kind: input, shape index: {}]
  %s3 = inlined_call_operand.vmem [shape: f32[8,1,256], index: 3, kind: input, shape index: {}]
  %s4 = inlined_call_operand.vmem [shape: f32[8,8,8], index: 4, kind: input, shape index: {}]
  %s5 = inlined_call_operand.vmem [shape: f32[8,1], index: 5, kind: input, shape index: {}]
  %s6 = inlined_call_operand.vmem [shape: f32[3,8], index: 6, kind: input, shape index: {}]
  %s7 = inlined_call_operand.vmem [shape: f32[3,1], index: 7, kind: input, shape index: {}]
  %s8 = inlined_call_operand.vmem [shape: f32[8,3,256], index: 8, kind: output, shape index: {}]
  %s9 = sld [smem:[#allocation0]]
  $region69: #{_cid_forward_core.3} parent=0
    _
  %s11 = ssub.s32 1, %s9
  %s12 = scalar_select 0, %s11, %s9
  %13 = sst [smem:[#allocation3]] %s0
  loop: start=0, step=1, limit=10
  $region2: #{_cid_forward_core.3} parent=0 // loop_pre_header
    _
  $region3: #{_cid_forward_core.3} parent=0 // loop_header
    %s15 = sphi 0, %s19
    %p16 = scmp.ge.s32.totalorder %s15, 10
    %s22 = sphi 0, %s34
    %s23 = sphi 0, %s30
    %s24 = sphi 0, %s22
    %s25 = sphi 0, %s23
    %s26 = sphi 0, %s24
    %s27 = sphi 0, %s25
    %s37 = sphi 0, %s39
    %s40 = sphi 0, %s37
    %s41 = sphi 0, %s40
    %s57 = sphi 0, %s41
    %s63 = sphi 0, %s65
    %s66 = sphi 0, %s63
    %s67 = sphi 0, %s66
    %s83 = sphi 0, %s67
    %s91 = sphi 0, %s93
    %s94 = sphi 0, %s91
    %s95 = sphi 0, %s94
    %s111 = sphi 0, %s95
    %s117 = sphi 0, %s119
    %s120 = sphi 0, %s117
    %s121 = sphi 0, %s120
    %s137 = sphi 0, %s121
    %s141 = sphi 0, %s141
    %s143 = sphi 0, %s141
    %s144 = sphi 0, %s143
    %s158 = sphi 0, %s144
    %s162 = sphi 0, %s162
    %s164 = sphi 0, %s162
    %s165 = sphi 0, %s164
    %s179 = sphi 0, %s165
    %s183 = sphi 0, %s183
    %s185 = sphi 0, %s183
    %s186 = sphi 0, %s185
    %s200 = sphi 0, %s186
    %s208 = sphi 0, %s210
    %s211 = sphi 0, %s208
    %s212 = sphi 0, %s211
    %s228 = sphi 0, %s212
  $region4: #{_cid_forward_core.3} parent=0 // loop_header_branch
    %18 = sbr.rel (%p16) target = $region8
  $region5: #{_cid_forward_core.3} parent=0 // loop_body
    %s20 = ssub.s32 %s15, 1
    %s21 = ssub.s32 %s15, 2
    %s28 = sadd.s32 1, %s23
    %p29 = scmp.ge.s32.totalorder %s28, 8
    %s30 = scalar_select %p29, 0, %s28
    %s31 = sadd.s32 1, %s22
    %s32 = scalar_select %p29, %s31, %s22
    %p33 = scmp.ge.s32.totalorder %s32, 1
    %s34 = scalar_select %p33, 0, %s32
    %s35 = ssub.s32 %s22, %s34
    %p36 = scmp.eq.s32.totalorder %s35, 0
    %s38 = sadd.s32 %s37, 1
    %s39 = scalar_select %p36, %s37, %s38
    %p42 = pneg %p36
    %p43 = scmp.eq.s32.totalorder %s15, 7
    %p44 = por %p42, %p43
    %p45 = scmp.ne.s32.totalorder %s37, %s40
    %p46 = scmp.eq.s32.totalorder %s15, 0
    %p47 = por %p45, %p46
    %p48 = scmp.ne.s32.totalorder %s37, %s40
    %p49 = scmp.eq.s32.totalorder %s20, 7
    %p50 = por %p48, %p49
    %p51 = scmp.ne.s32.totalorder %s40, %s41
    %p52 = scmp.eq.s32.totalorder %s20, 0
    %p53 = por %p51, %p52
    %p54 = scmp.ne.s32.totalorder %s40, %s41
    %p55 = scmp.eq.s32.totalorder %s21, 7
    %p56 = por %p54, %p55
    %p58 = scmp.ne.s32.totalorder %s41, %s57
    %p59 = scmp.eq.s32.totalorder %s21, 0
    %p60 = por %p58, %p59
    %s61 = ssub.s32 %s22, %s34
    %p62 = scmp.eq.s32.totalorder %s61, 0
    %s64 = sadd.s32 %s63, 1
    %s65 = scalar_select %p62, %s63, %s64
    %p68 = pneg %p62
    %p69 = scmp.eq.s32.totalorder %s15, 7
    %p70 = por %p68, %p69
    %p71 = scmp.ne.s32.totalorder %s63, %s66
    %p72 = scmp.eq.s32.totalorder %s15, 0
    %p73 = por %p71, %p72
    %p74 = scmp.ne.s32.totalorder %s63, %s66
    %p75 = scmp.eq.s32.totalorder %s20, 7
    %p76 = por %p74, %p75
    %p77 = scmp.ne.s32.totalorder %s66, %s67
    %p78 = scmp.eq.s32.totalorder %s20, 0
    %p79 = por %p77, %p78
    %p80 = scmp.ne.s32.totalorder %s66, %s67
    %p81 = scmp.eq.s32.totalorder %s21, 7
    %p82 = por %p80, %p81
    %p84 = scmp.ne.s32.totalorder %s67, %s83
    %p85 = scmp.eq.s32.totalorder %s21, 0
    %p86 = por %p84, %p85
    %s87 = ssub.s32 %s23, %s30
    %s88 = ssub.s32 %s22, %s34
    %s89 = sor.u32 %s87, %s88
    %p90 = scmp.eq.s32.totalorder %s89, 0
    %s92 = sadd.s32 %s91, 1
    %s93 = scalar_select %p90, %s91, %s92
    %p96 = pneg %p90
    %p97 = scmp.eq.s32.totalorder %s15, 7
    %p98 = por %p96, %p97
    %p99 = scmp.ne.s32.totalorder %s91, %s94
    %p100 = scmp.eq.s32.totalorder %s15, 0
    %p101 = por %p99, %p100
    %p102 = scmp.ne.s32.totalorder %s91, %s94
    %p103 = scmp.eq.s32.totalorder %s20, 7
    %p104 = por %p102, %p103
    %p105 = scmp.ne.s32.totalorder %s94, %s95
    %p106 = scmp.eq.s32.totalorder %s20, 0
    %p107 = por %p105, %p106
    %p108 = scmp.ne.s32.totalorder %s94, %s95
    %p109 = scmp.eq.s32.totalorder %s21, 7
    %p110 = por %p108, %p109
    %p112 = scmp.ne.s32.totalorder %s95, %s111
    %p113 = scmp.eq.s32.totalorder %s21, 0
    %p114 = por %p112, %p113
    %s115 = ssub.s32 %s23, %s30
    %p116 = scmp.eq.s32.totalorder %s115, 0
    %s118 = sadd.s32 %s117, 1
    %s119 = scalar_select %p116, %s117, %s118
    %p122 = pneg %p116
    %p123 = scmp.eq.s32.totalorder %s15, 7
    %p124 = por %p122, %p123
    %p125 = scmp.ne.s32.totalorder %s117, %s120
    %p126 = scmp.eq.s32.totalorder %s15, 0
    %p127 = por %p125, %p126
    %p128 = scmp.ne.s32.totalorder %s117, %s120
    %p129 = scmp.eq.s32.totalorder %s20, 7
    %p130 = por %p128, %p129
    %p131 = scmp.ne.s32.totalorder %s120, %s121
    %p132 = scmp.eq.s32.totalorder %s20, 0
    %p133 = por %p131, %p132
    %p134 = scmp.ne.s32.totalorder %s120, %s121
    %p135 = scmp.eq.s32.totalorder %s21, 7
    %p136 = por %p134, %p135
    %p138 = scmp.ne.s32.totalorder %s121, %s137
    %p139 = scmp.eq.s32.totalorder %s21, 0
    %p140 = por %p138, %p139
    %s142 = sadd.s32 %s141, 1
    %p145 = scmp.eq.s32.totalorder %s15, 7
    %p146 = scmp.ne.s32.totalorder %s141, %s143
    %p147 = scmp.eq.s32.totalorder %s15, 0
    %p148 = por %p146, %p147
    %p149 = scmp.ne.s32.totalorder %s141, %s143
    %p150 = scmp.eq.s32.totalorder %s20, 7
    %p151 = por %p149, %p150
    %p152 = scmp.ne.s32.totalorder %s143, %s144
    %p153 = scmp.eq.s32.totalorder %s20, 0
    %p154 = por %p152, %p153
    %p155 = scmp.ne.s32.totalorder %s143, %s144
    %p156 = scmp.eq.s32.totalorder %s21, 7
    %p157 = por %p155, %p156
    %p159 = scmp.ne.s32.totalorder %s144, %s158
    %p160 = scmp.eq.s32.totalorder %s21, 0
    %p161 = por %p159, %p160
    %s163 = sadd.s32 %s162, 1
    %p166 = scmp.eq.s32.totalorder %s15, 7
    %p167 = scmp.ne.s32.totalorder %s162, %s164
    %p168 = scmp.eq.s32.totalorder %s15, 0
    %p169 = por %p167, %p168
    %p170 = scmp.ne.s32.totalorder %s162, %s164
    %p171 = scmp.eq.s32.totalorder %s20, 7
    %p172 = por %p170, %p171
    %p173 = scmp.ne.s32.totalorder %s164, %s165
    %p174 = scmp.eq.s32.totalorder %s20, 0
    %p175 = por %p173, %p174
    %p176 = scmp.ne.s32.totalorder %s164, %s165
    %p177 = scmp.eq.s32.totalorder %s21, 7
    %p178 = por %p176, %p177
    %p180 = scmp.ne.s32.totalorder %s165, %s179
    %p181 = scmp.eq.s32.totalorder %s21, 0
    %p182 = por %p180, %p181
    %s184 = sadd.s32 %s183, 1
    %p187 = scmp.eq.s32.totalorder %s15, 7
    %p188 = scmp.ne.s32.totalorder %s183, %s185
    %p189 = scmp.eq.s32.totalorder %s15, 0
    %p190 = por %p188, %p189
    %p191 = scmp.ne.s32.totalorder %s183, %s185
    %p192 = scmp.eq.s32.totalorder %s20, 7
    %p193 = por %p191, %p192
    %p194 = scmp.ne.s32.totalorder %s185, %s186
    %p195 = scmp.eq.s32.totalorder %s20, 0
    %p196 = por %p194, %p195
    %p197 = scmp.ne.s32.totalorder %s185, %s186
    %p198 = scmp.eq.s32.totalorder %s21, 7
    %p199 = por %p197, %p198
    %p201 = scmp.ne.s32.totalorder %s186, %s200
    %p202 = scmp.eq.s32.totalorder %s21, 0
    %p203 = por %p201, %p202
    %s204 = ssub.s32 %s23, %s30
    %s205 = ssub.s32 %s22, %s34
    %s206 = sor.u32 %s204, %s205
    %p207 = scmp.eq.s32.totalorder %s206, 0
    %s209 = sadd.s32 %s208, 1
    %s210 = scalar_select %p207, %s208, %s209
    %p213 = pneg %p207
    %p214 = scmp.eq.s32.totalorder %s15, 7
    %p215 = por %p213, %p214
    %p216 = scmp.ne.s32.totalorder %s208, %s211
    %p217 = scmp.eq.s32.totalorder %s15, 0
    %p218 = por %p216, %p217
    %p219 = scmp.ne.s32.totalorder %s208, %s211
    %p220 = scmp.eq.s32.totalorder %s20, 7
    %p221 = por %p219, %p220
    %p222 = scmp.ne.s32.totalorder %s211, %s212
    %p223 = scmp.eq.s32.totalorder %s20, 0
    %p224 = por %p222, %p223
    %p225 = scmp.ne.s32.totalorder %s211, %s212
    %p226 = scmp.eq.s32.totalorder %s21, 7
    %p227 = por %p225, %p226
    %p229 = scmp.ne.s32.totalorder %s212, %s228
    %p230 = scmp.eq.s32.totalorder %s21, 0
    %p231 = por %p229, %p230
    %p232 = scmp.le.s32.totalorder 1, %s15
    %p233 = scmp.lt.s32.totalorder %s15, 9
    %p234 = pnand %p232, %p233
    %p235 = pneg %p234
    // Predicated region
    $region9: #{_cid_forward_core.3} parent=5 // pred_check
      _
    $region10: #{_cid_forward_core.3} parent=5 // pred_check_branch
      %237 = sbr.rel (%p234) target = $region12
    $region11: #{_cid_forward_core.3} parent=5 // pred_region
      %s238 = ssub.s32 %s15, 1
      // Predicated region
      $region13: #{_cid_forward_core.3} parent=11 // pred_check
        %p239 = pneg %p53
      $region14: #{_cid_forward_core.3} parent=11 // pred_check_branch
        %241 = sbr.rel (%p239) target = $region16
      $region15: #{_cid_forward_core.3} parent=11 // pred_region
        %s242 = smul.u32 2, %s24
        %p243 = scmp.lt.s32.totalorder %s242, 1
        %s244 = scalar_select %p243, %s242, 1
        %s245 = smul.addr %s244, 8
        %s246 = scalar_lea.vmem %s1, %s245
        %s247 = smul.u32 2, %s24
      $region16: #{_cid_forward_core.3} parent=11 // pred_fallthru
        _
      // Predicated region
      $region17: #{_cid_forward_core.3} parent=11 // pred_check
        %p248 = pneg %p79
      $region18: #{_cid_forward_core.3} parent=11 // pred_check_branch
        %250 = sbr.rel (%p248) target = $region20
      $region19: #{_cid_forward_core.3} parent=11 // pred_region
        %s251 = smul.u32 2, %s24
        %p252 = scmp.lt.s32.totalorder %s251, 1
        %s253 = scalar_select %p252, %s251, 1
        %s254 = smul.addr %s253, 8
        %s255 = scalar_lea.vmem %s2, %s254
        %s256 = smul.u32 2, %s24
      $region20: #{_cid_forward_core.3} parent=11 // pred_fallthru
        _
      // Predicated region
      $region21: #{_cid_forward_core.3} parent=11 // pred_check
        %p257 = pneg %p154
      $region22: #{_cid_forward_core.3} parent=11 // pred_check_branch
        %259 = sbr.rel (%p257) target = $region24
      $region23: #{_cid_forward_core.3} parent=11 // pred_region
        _
      $region24: #{_cid_forward_core.3} parent=11 // pred_fallthru
        _
      // Predicated region
      $region25: #{_cid_forward_core.3} parent=11 // pred_check
        %p260 = pneg %p175
      $region26: #{_cid_forward_core.3} parent=11 // pred_check_branch
        %262 = sbr.rel (%p260) target = $region28
      $region27: #{_cid_forward_core.3} parent=11 // pred_region
        _
      $region28: #{_cid_forward_core.3} parent=11 // pred_fallthru
        _
      // Predicated region
      $region29: #{_cid_forward_core.3} parent=11 // pred_check
        %p263 = pneg %p196
      $region30: #{_cid_forward_core.3} parent=11 // pred_check_branch
        %265 = sbr.rel (%p263) target = $region32
      $region31: #{_cid_forward_core.3} parent=11 // pred_region
        _
      $region32: #{_cid_forward_core.3} parent=11 // pred_fallthru
        _
    $region12: #{_cid_forward_core.3} parent=5 // pred_fallthru
      _
    %p266 = scmp.lt.s32.totalorder %s15, 8
    // Predicated region
    $region33: #{_cid_forward_core.3} parent=5 // pred_check
      %p267 = pneg %p266
    $region34: #{_cid_forward_core.3} parent=5 // pred_check_branch
      %269 = sbr.rel (%p267) target = $region36
    $region35: #{_cid_forward_core.3} parent=5 // pred_region
      // Predicated region
      $region37: #{_cid_forward_core.3} parent=35 // pred_check
        %p270 = pneg %p101
      $region38: #{_cid_forward_core.3} parent=35 // pred_check_branch
        %272 = sbr.rel (%p270) target = $region40
      $region39: #{_cid_forward_core.3} parent=35 // pred_region
        %s273 = smul.u32 2, %s22
        %p274 = scmp.lt.s32.totalorder %s23, 7
        %s275 = scalar_select %p274, %s23, 7
        %p276 = scmp.lt.s32.totalorder %s273, 1
        %s277 = scalar_select %p276, %s273, 1
        %s278 = smul.addr %s275, 2
        %s279 = sadd.s32 %s277, %s278
        %s280 = scalar_lea.vmem %s3, %s279
        %s281 = smul.u32 2, %s22
      $region40: #{_cid_forward_core.3} parent=35 // pred_fallthru
        _
      // Predicated region
      $region41: #{_cid_forward_core.3} parent=35 // pred_check
        %p282 = pneg %p127
      $region42: #{_cid_forward_core.3} parent=35 // pred_check_branch
        %284 = sbr.rel (%p282) target = $region44
      $region43: #{_cid_forward_core.3} parent=35 // pred_region
        %p285 = scmp.lt.s32.totalorder %s23, 7
        %s286 = scalar_select %p285, %s23, 7
        %s287 = smul.addr %s286, 8
        %s288 = scalar_lea.vmem %s4, %s287
      $region44: #{_cid_forward_core.3} parent=35 // pred_fallthru
        _
    $region36: #{_cid_forward_core.3} parent=5 // pred_fallthru
      _
    %p289 = scmp.le.s32.totalorder 1, %s15
    %p290 = scmp.lt.s32.totalorder %s15, 9
    %p291 = pnand %p289, %p290
    %p292 = pneg %p291
    // Predicated region
    $region45: #{_cid_forward_core.3} parent=5 // pred_check
      _
    $region46: #{_cid_forward_core.3} parent=5 // pred_check_branch
      %294 = sbr.rel (%p291) target = $region48
    $region47: #{_cid_forward_core.3} parent=5 // pred_region
      %s295 = ssub.s32 %s15, 1
      %s296 = smul.u32 2, %s24
      %p297 = scmp.lt.s32.totalorder %s296, 1
      %s298 = scalar_select %p297, %s296, 1
      %s299 = smul.addr %s298, 8
      %s300 = scalar_lea.vmem %s1, %s299
      %p301 = pneg %p53
      %p302 = pneg %p50
      %s303 = smul.u32 2, %s24
      %p304 = scmp.lt.s32.totalorder %s303, 1
      %s305 = scalar_select %p304, %s303, 1
      %s306 = smul.addr %s305, 8
      %s307 = scalar_lea.vmem %s2, %s306
      %p308 = pneg %p79
      %p309 = pneg %p76
      %s310 = smul.u32 2, %s24
      %p311 = scmp.lt.s32.totalorder %s25, 7
      %s312 = scalar_select %p311, %s25, 7
      %p313 = scmp.lt.s32.totalorder %s310, 1
      %s314 = scalar_select %p313, %s310, 1
      %s315 = smul.addr %s312, 2
      %s316 = sadd.s32 %s314, %s315
      %s317 = scalar_lea.vmem %s3, %s316
      %p318 = pneg %p107
      %p319 = pneg %p104
      %p320 = scmp.lt.s32.totalorder %s25, 7
      %s321 = scalar_select %p320, %s25, 7
      %s322 = smul.addr %s321, 8
      %s323 = scalar_lea.vmem %s4, %s322
      %p324 = pneg %p133
      %p325 = pneg %p130
      %p326 = pneg %p154
      %p327 = pneg %p151
      %p328 = pneg %p175
      %p329 = pneg %p172
      %p330 = pneg %p196
      %p331 = pneg %p193
      %p332 = pneg %p224
      %p333 = pneg %p221
      %s334 = smul.u32 2, %s24
      %p335 = scmp.lt.s32.totalorder %s25, 7
      %s336 = scalar_select %p335, %s25, 7
      %p337 = scmp.lt.s32.totalorder %s334, 1
      %s338 = scalar_select %p337, %s334, 1
      %s339 = smul.addr %s336, 2
      %s340 = sadd.s32 %s338, %s339
      %s341 = smul.addr %s340, 4
      %s342 = scalar_lea.vmem %s8, %s341
      %s343 = smul.u32 2, %s24
      %p344 = scmp.lt.s32.totalorder %s343, 1
      %s345 = scalar_select %p344, %s343, 1
      %s346 = smul.addr %s345, 8
      %s347 = scalar_lea.vmem %s1, %s346
      %s348 = smul.u32 2, %s24
      %s349 = smul.u32 2, %s24
      %p350 = scmp.lt.s32.totalorder %s349, 1
      %s351 = scalar_select %p350, %s349, 1
      %s352 = smul.addr %s351, 8
      %s353 = scalar_lea.vmem %s2, %s352
      %s354 = smul.u32 2, %s24
      %s355 = smul.u32 2, %s24
      %p356 = scmp.lt.s32.totalorder %s25, 7
      %s357 = scalar_select %p356, %s25, 7
      %p358 = scmp.lt.s32.totalorder %s355, 1
      %s359 = scalar_select %p358, %s355, 1
      %s360 = smul.addr %s357, 2
      %s361 = sadd.s32 %s359, %s360
      %s362 = scalar_lea.vmem %s3, %s361
      %s363 = smul.u32 2, %s24
      %p364 = scmp.lt.s32.totalorder %s25, 7
      %s365 = scalar_select %p364, %s25, 7
      %s366 = smul.addr %s365, 8
      %s367 = scalar_lea.vmem %s4, %s366
      %s368 = smul.u32 2, %s24
      %p369 = scmp.lt.s32.totalorder %s25, 7
      %s370 = scalar_select %p369, %s25, 7
      %p371 = scmp.lt.s32.totalorder %s368, 1
      %s372 = scalar_select %p371, %s368, 1
      %s373 = smul.addr %s370, 2
      %s374 = sadd.s32 %s372, %s373
      %s375 = smul.addr %s374, 4
      %s376 = scalar_lea.vmem %s8, %s375
      %s377 = smul.u32 2, %s24
      %s378 = sld [smem:[#allocation3]]
      %p379 = scmp.lt.s32.totalorder %s25, %s378
      // Predicated region
      $region49: #{_cid_forward_core.3} parent=47 // pred_check
        %p380 = pneg %p379
      $region50: #{_cid_forward_core.3} parent=47 // pred_check_branch
        %382 = sbr.rel (%p380) target = $region52
      $region51: #{_cid_forward_core.3} parent=47 // pred_region
        %v383 = vld [vmem:[%s347] sm:$0xff]
        %v384 = vld [vmem:[%s347 + $0x8] sm:$0xff]
        %v385 = vld [vmem:[%s367] sm:$0xff]
        %v386 = vld [vmem:[%s353] sm:$0xff]
        %v387 = vld [vmem:[%s353 + $0x8] sm:$0xff]
        %v388 = vld [vmem:[%s362] sm:$0x3]
        %v390 = vlaneseq
        %v391 = vshrl.u32 %v390, 7
        %v392 = vsub.s32 0, %v391
        %v393 = vrot.slane %v388, %v392
        %v394 = vlaneseq
        %v395 = vshrl.u32 %v394, 7
        %v396 = vsub.s32 1, %v395
        %v397 = vrot.slane %v388, %v396
        %v400 = vmul.f32 %v386, %v393
        %v401 = vmul.f32 %v387, %v397
        %vm402 = vcmask 64512
        %v404 = vsel %vm402, %v385, 0
        %406 = vmatprep.subr.mxu0 %v384
        %407 = vmatpush1.msra.mxu0 %v383
        %408 = vmatprep.subr.mxu0 0.0
        %409 = vmatpush1.msra.mxu0 0.0
        %410 = vmatprep.subr.mxu0 0.0
        %411 = vmatpush1.msra.mxu0 0.0
        %412 = vmatprep.subr.mxu0 0.0
        %413 = vmatpush1.msra.mxu0 0.0
        %414 = vmatprep.subr.mxu0 0.0
        %415 = vmatpush1.msra.mxu0 0.0
        %416 = vmatprep.subr.mxu0 0.0
        %417 = vmatpush1.msra.mxu0 0.0
        %418 = vmatprep.subr.mxu0 0.0
        %419 = vmatpush1.msra.mxu0 0.0
        %420 = vmatprep.subr.mxu0 0.0
        %421 = vmatpush1.msra.mxu0 0.0
        %422 = vmatprep.subr.mxu0 0.0
        %423 = vmatpush1.msra.mxu0 0.0
        %424 = vmatprep.subr.mxu0 0.0
        %425 = vmatpush1.msra.mxu0 0.0
        %426 = vmatprep.subr.mxu0 0.0
        %427 = vmatpush1.msra.mxu0 0.0
        %428 = vmatprep.subr.mxu0 0.0
        %429 = vmatpush1.msra.mxu0 0.0
        %430 = vmatprep.subr.mxu0 0.0
        %431 = vmatpush1.msra.mxu0 0.0
        %432 = vmatprep.subr.mxu0 0.0
        %433 = vmatpush1.msra.mxu0 0.0
        %434 = vmatprep.subr.mxu0 0.0
        %435 = vmatpush1.msra.mxu0 0.0
        %436 = vmatprep.subr.mxu0 0.0
        %437 = vmatpush1.msra.mxu0 0.0
        %438 = vmatprep.subr.mxu0 0.0
        %439 = vmatpush1.msra.mxu0 0.0
        %440 = vmatprep.subr.mxu0 0.0
        %441 = vmatpush1.msra.mxu0 0.0
        %442 = vmatprep.subr.mxu0 0.0
        %443 = vmatpush1.msra.mxu0 0.0
        %444 = vmatprep.subr.mxu0 0.0
        %445 = vmatpush1.msra.mxu0 0.0
        %446 = vmatprep.subr.mxu0 0.0
        %447 = vmatpush1.msra.mxu0 0.0
        %448 = vmatprep.subr.mxu0 0.0
        %449 = vmatpush1.msra.mxu0 0.0
        %450 = vmatprep.subr.mxu0 0.0
        %451 = vmatpush1.msra.mxu0 0.0
        %452 = vmatprep.subr.mxu0 0.0
        %453 = vmatpush1.msra.mxu0 0.0
        %454 = vmatprep.subr.mxu0 0.0
        %455 = vmatpush1.msra.mxu0 0.0
        %456 = vmatprep.subr.mxu0 0.0
        %457 = vmatpush1.msra.mxu0 0.0
        %458 = vmatprep.subr.mxu0 0.0
        %459 = vmatpush1.msra.mxu0 0.0
        %460 = vmatprep.subr.mxu0 0.0
        %461 = vmatpush1.msra.mxu0 0.0
        %462 = vmatprep.subr.mxu0 0.0
        %463 = vmatpush1.msra.mxu0 0.0
        %464 = vmatprep.subr.mxu0 0.0
        %465 = vmatpush1.msra.mxu0 0.0
        %466 = vmatprep.subr.mxu0 0.0
        %467 = vmatpush1.msra.mxu0 0.0
        %468 = vmatprep.subr.mxu0 0.0
        %469 = vmatpush1.msra.mxu0 0.0
        %470 = vmatprep.mubr.f32.mxu0 0.0
        %471 = vmatmul.mubr.f32.gmra.mrb[0].mxu0 %v404
        %v472 = vpop.f32.mrb[0].mxu0
        %v473 = vadd.f32 %v400, %v472
        %v474 = vpop.f32.mrb[0].mxu0
        %v475 = vadd.f32 %v401, %v474
        %476 = vdwg.mxu0
        %v477 = vld [vmem:[%s5] sm:$0xff]
        %479 = vset.pattern.permute.xlu0 0
        %480 = vperm.xlu0 %479, %v477
        %v481 = vpop.permute.xlu0 %480
        %v483 = vadd.f32 %v473, %v481
        %v484 = vadd.f32 %v475, %v481
        %v485 = vmax.f32 %v483, 0.0
        %v486 = vmax.f32 %v484, 0.0
        %v487 = vld [vmem:[%s6] sm:$0x7]
        %v488 = vld [vmem:[%s7] sm:$0x7]
        %490 = vset.pattern.permute.xlu0 0
        %491 = vperm.xlu0 %490, %v488
        %v492 = vpop.permute.xlu0 %491
        %v495 = vsel %vm402, %v487, 0
        %497 = vmatprep.subr.mxu0 %v486
        %498 = vmatpush1.msra.mxu0 %v485
        %499 = vmatprep.subr.mxu0 0.0
        %500 = vmatpush1.msra.mxu0 0.0
        %501 = vmatprep.subr.mxu0 0.0
        %502 = vmatpush1.msra.mxu0 0.0
        %503 = vmatprep.subr.mxu0 0.0
        %504 = vmatpush1.msra.mxu0 0.0
        %505 = vmatprep.subr.mxu0 0.0
        %506 = vmatpush1.msra.mxu0 0.0
        %507 = vmatprep.subr.mxu0 0.0
        %508 = vmatpush1.msra.mxu0 0.0
        %509 = vmatprep.subr.mxu0 0.0
        %510 = vmatpush1.msra.mxu0 0.0
        %511 = vmatprep.subr.mxu0 0.0
        %512 = vmatpush1.msra.mxu0 0.0
        %513 = vmatprep.subr.mxu0 0.0
        %514 = vmatpush1.msra.mxu0 0.0
        %515 = vmatprep.subr.mxu0 0.0
        %516 = vmatpush1.msra.mxu0 0.0
        %517 = vmatprep.subr.mxu0 0.0
        %518 = vmatpush1.msra.mxu0 0.0
        %519 = vmatprep.subr.mxu0 0.0
        %520 = vmatpush1.msra.mxu0 0.0
        %521 = vmatprep.subr.mxu0 0.0
        %522 = vmatpush1.msra.mxu0 0.0
        %523 = vmatprep.subr.mxu0 0.0
        %524 = vmatpush1.msra.mxu0 0.0
        %525 = vmatprep.subr.mxu0 0.0
        %526 = vmatpush1.msra.mxu0 0.0
        %527 = vmatprep.subr.mxu0 0.0
        %528 = vmatpush1.msra.mxu0 0.0
        %529 = vmatprep.subr.mxu0 0.0
        %530 = vmatpush1.msra.mxu0 0.0
        %531 = vmatprep.subr.mxu0 0.0
        %532 = vmatpush1.msra.mxu0 0.0
        %533 = vmatprep.subr.mxu0 0.0
        %534 = vmatpush1.msra.mxu0 0.0
        %535 = vmatprep.subr.mxu0 0.0
        %536 = vmatpush1.msra.mxu0 0.0
        %537 = vmatprep.subr.mxu0 0.0
        %538 = vmatpush1.msra.mxu0 0.0
        %539 = vmatprep.subr.mxu0 0.0
        %540 = vmatpush1.msra.mxu0 0.0
        %541 = vmatprep.subr.mxu0 0.0
        %542 = vmatpush1.msra.mxu0 0.0
        %543 = vmatprep.subr.mxu0 0.0
        %544 = vmatpush1.msra.mxu0 0.0
        %545 = vmatprep.subr.mxu0 0.0
        %546 = vmatpush1.msra.mxu0 0.0
        %547 = vmatprep.subr.mxu0 0.0
        %548 = vmatpush1.msra.mxu0 0.0
        %549 = vmatprep.subr.mxu0 0.0
        %550 = vmatpush1.msra.mxu0 0.0
        %551 = vmatprep.subr.mxu0 0.0
        %552 = vmatpush1.msra.mxu0 0.0
        %553 = vmatprep.subr.mxu0 0.0
        %554 = vmatpush1.msra.mxu0 0.0
        %555 = vmatprep.subr.mxu0 0.0
        %556 = vmatpush1.msra.mxu0 0.0
        %557 = vmatprep.subr.mxu0 0.0
        %558 = vmatpush1.msra.mxu0 0.0
        %559 = vmatprep.subr.mxu0 0.0
        %560 = vmatpush1.msra.mxu0 0.0
        %561 = vmatprep.mubr.f32.mxu0 0.0
        %562 = vmatmul.mubr.f32.gmra.mrb[0].mxu0 %v495
        %v563 = vpop.f32.mrb[0].mxu0
        %v564 = vadd.f32 %v492, %v563
        %v565 = vpop.f32.mrb[0].mxu0
        %v566 = vadd.f32 %v492, %v565
        %567 = vdwg.mxu0
        %v568 = vxor.u32 %v564, 2147483648
        %v569 = vxor.u32 %v566, 2147483648
        %v570 = vmul.f32 %v568, 1.442695
        %v571 = vpow.pop %v570
        %v572 = vmul.f32 %v569, 1.442695
        %v573 = vpow.pop %v572
        %v574 = vadd.f32 %v571, 1.0
        %v575 = vadd.f32 %v573, 1.0
        %v576 = vrcp.pop %v574
        %v577 = vmul.f32 1.0, %v576
        %v578 = vrcp.pop %v575
        %v579 = vmul.f32 1.0, %v578
        %v580 = vmax.f32 %v577, 0.0001
        %v581 = vmax.f32 %v579, 0.0001
        %v582 = vmin.f32 %v580, 0.9999
        %v583 = vmin.f32 %v581, 0.9999
        %v586 = vcombine.low %v582, %v583
        %588 = vst [vmem:[%s376] sm:$0x77] %v586
      $region52: #{_cid_forward_core.3} parent=47 // pred_fallthru
        _
      %p589 = scmp.ge.s32.totalorder %s25, %s378
      // Predicated region
      $region53: #{_cid_forward_core.3} parent=47 // pred_check
        %p590 = pneg %p589
      $region54: #{_cid_forward_core.3} parent=47 // pred_check_branch
        %592 = sbr.rel (%p590) target = $region56
      $region55: #{_cid_forward_core.3} parent=47 // pred_region
        %593 = vst [vmem:[%s376] sm:$0x77] 0.0
      $region56: #{_cid_forward_core.3} parent=47 // pred_fallthru
        _
      %s594 = smul.u32 2, %s24
      %p595 = scmp.lt.s32.totalorder %s25, 7
      %s596 = scalar_select %p595, %s25, 7
      %p597 = scmp.lt.s32.totalorder %s594, 1
      %s598 = scalar_select %p597, %s594, 1
      %s599 = smul.addr %s596, 2
      %s600 = sadd.s32 %s598, %s599
      %s601 = smul.addr %s600, 4
      %s602 = scalar_lea.vmem %s8, %s601
      // Predicated region
      $region57: #{_cid_forward_core.3} parent=47 // pred_check
        %p603 = pneg %p221
      $region58: #{_cid_forward_core.3} parent=47 // pred_check_branch
        %605 = sbr.rel (%p603) target = $region60
      $region59: #{_cid_forward_core.3} parent=47 // pred_region
        %s606 = smul.u32 2, %s24
      $region60: #{_cid_forward_core.3} parent=47 // pred_fallthru
        _
    $region48: #{_cid_forward_core.3} parent=5 // pred_fallthru
      _
    %p607 = scmp.le.s32.totalorder 2, %s15
    // Predicated region
    $region61: #{_cid_forward_core.3} parent=5 // pred_check
      %p608 = pneg %p607
    $region62: #{_cid_forward_core.3} parent=5 // pred_check_branch
      %610 = sbr.rel (%p608) target = $region64
    $region63: #{_cid_forward_core.3} parent=5 // pred_region
      %s611 = ssub.s32 %s15, 2
      // Predicated region
      $region65: #{_cid_forward_core.3} parent=63 // pred_check
        %p612 = pneg %p227
      $region66: #{_cid_forward_core.3} parent=63 // pred_check_branch
        %614 = sbr.rel (%p612) target = $region68
      $region67: #{_cid_forward_core.3} parent=63 // pred_region
        %s615 = smul.u32 2, %s26
        %p616 = scmp.lt.s32.totalorder %s27, 7
        %s617 = scalar_select %p616, %s27, 7
        %p618 = scmp.lt.s32.totalorder %s615, 1
        %s619 = scalar_select %p618, %s615, 1
        %s620 = smul.addr %s617, 2
        %s621 = sadd.s32 %s619, %s620
        %s622 = smul.addr %s621, 4
        %s623 = scalar_lea.vmem %s8, %s622
      $region68: #{_cid_forward_core.3} parent=63 // pred_fallthru
        _
    $region64: #{_cid_forward_core.3} parent=5 // pred_fallthru
      _
  $region6: #{_cid_forward_core.3} parent=0 // loop_footer
    %s19 = sadd.s32 1, %s15
  $region7: #{_cid_forward_core.3} parent=0 // loop_footer_branch
    %14 = sbr.rel target = $region3
  $region8: #{_cid_forward_core.3} parent=0 // loop_exit
    _

</llo_original>
